<compile_context>
chip_gen: v6e
topology: v6e:2x2x1
jax: 0.10.0
libtpu: 0.0.40
codegen_flags: <defaults>
</compile_context>

<pallas_src>
import functools

import jax
import jax.numpy as jnp
import numpy as np
from jax.experimental import pallas as pl
from jax.experimental.pallas import tpu as pltpu

_BIG = 1e30          # sentinel squared-norm for padded points (never wins a min)
_DEF_TILE = 1024     # default N/M tile size (multiple of 256; 4 MiB f32 d2 tile)


def _round_up(x, m):
    return ((x + m - 1) // m) * m


# ----------------------------------------------------------------------------
# Glue: range image (B, 2, H, W) -> point cloud (B, H*W, 4) = (x, y, z, intensity)
# Elementwise O(B*N) back-projection stays in plain JAX (not a kernel candidate).
# TODO(synk): exact FOV constants of range_image_to_pointcloud_pytorch are
# unavailable; a standard spherical back-projection (fov_up=3, fov_down=-25) is used.
# ----------------------------------------------------------------------------
def range_image_to_pointcloud(image, fov_up_deg=3.0, fov_down_deg=-25.0):
    B, C, H, W = image.shape
    r = image[:, 0].astype(jnp.float32)          # (B, H, W) range
    intensity = image[:, 1].astype(jnp.float32)  # (B, H, W)
    fov_up = jnp.deg2rad(jnp.float32(fov_up_deg))
    fov_down = jnp.deg2rad(jnp.float32(fov_down_deg))
    cols = (jnp.arange(W, dtype=jnp.float32) + 0.5) / W
    rows = (jnp.arange(H, dtype=jnp.float32) + 0.5) / H
    az = (1.0 - 2.0 * cols) * jnp.pi                     # (W,)
    el = fov_up - rows * (fov_up - fov_down)             # (H,)
    az = az[None, None, :]
    el = el[None, :, None]
    x = r * jnp.cos(el) * jnp.cos(az)
    y = r * jnp.cos(el) * jnp.sin(az)
    z = r * jnp.sin(el)
    pc = jnp.stack([x, y, z, intensity], axis=-1)        # (B, H, W, 4)
    return pc.reshape(B, H * W, 4)


# ----------------------------------------------------------------------------
# Pallas kernel: tiled symmetric chamfer distance, one scalar per batch.
#   p_ref  : (1, 8, TN)  augmented pred coords  (-2x,-2y,-2z, ||p||^2, 1, 0,0,0)
#   g_ref  : (1, 8, TM)  augmented gt coords    ( x,  y,  z,  1, ||g||^2, 0,0,0)
#   o_ref  : (1, 8, 128) per-batch scalar accumulator (broadcast over the tile)
#   row_acc: (TN, 1)     running min over the M axis (innermost grid axis)
#   col_acc: (1, M_pad)  running min over the N axis, persistent per batch
# ----------------------------------------------------------------------------
def _chamfer_kernel(p_ref, g_ref, o_ref, row_acc, col_acc, *, n_true, m_true):
    ni = pl.program_id(1)
    mj = pl.program_id(2)
    nt = pl.num_programs(1)
    mt = pl.num_programs(2)
    tn = p_ref.shape[2]
    tm = g_ref.shape[2]

    # per-batch output accumulator init (output block stays resident across ni, mj)
    @pl.when(jnp.logical_and(ni == 0, mj == 0))
    def _():
        o_ref[...] = jnp.zeros(o_ref.shape, o_ref.dtype)

    # One MXU contraction over the 8-deep coord (sublane) axis yields the full
    # squared distance ||p||^2 + ||g||^2 - 2<p,g> for this (TN, TM) tile.
    d2 = jax.lax.dot_general(
        p_ref[0], g_ref[0],
        dimension_numbers=(((0,), (0,)), ((), ())),
        preferred_element_type=jnp.float32)                       # (TN, TM)

    # ---- pred -> gt: running min over the M (innermost) axis ----------------
    @pl.when(mj == 0)
    def _():
        row_acc[...] = jnp.full(row_acc.shape, jnp.inf, row_acc.dtype)

    row_acc[...] = jnp.minimum(row_acc[...],
                               jnp.min(d2, axis=1, keepdims=True))

    # ---- gt -> pred: running min over the N axis into a persistent slab -----
    off = pl.multiple_of(mj * tm, tm)

    @pl.when(ni == 0)
    def _():
        col_acc[:, pl.ds(off, tm)] = jnp.full((1, tm), jnp.inf, col_acc.dtype)

    col_acc[:, pl.ds(off, tm)] = jnp.minimum(
        col_acc[:, pl.ds(off, tm)],
        jnp.min(d2, axis=0, keepdims=True))

    # ---- finalize pred -> gt term for this N tile (last M tile) -------------
    @pl.when(mj == mt - 1)
    def _():
        rm = jnp.maximum(row_acc[...], 0.0)                       # (TN, 1)
        ridx = jax.lax.broadcasted_iota(jnp.int32, rm.shape, 0) + ni * tn
        rm = jnp.where(ridx < n_true, rm, 0.0)                    # drop padded rows
        o_ref[...] += jnp.sum(rm) * (1.0 / n_true)

    # ---- finalize gt -> pred term for this M slice (last N tile) ------------
    @pl.when(ni == nt - 1)
    def _():
        cm = jnp.maximum(col_acc[:, pl.ds(off, tm)], 0.0)         # (1, TM)
        cidx = jax.lax.broadcasted_iota(jnp.int32, cm.shape, 1) + off
        cm = jnp.where(cidx < m_true, cm, 0.0)                    # drop padded cols
        o_ref[...] += jnp.sum(cm) * (1.0 / m_true)


def chamfer_distance_pallas(pc_pred, pc_gt, *, tile_n=_DEF_TILE, tile_m=_DEF_TILE):
    """pc_pred: (B, N, 3), pc_gt: (B, M, 3) -> per-batch symmetric chamfer (B,)."""
    B, N, _ = pc_pred.shape
    M = pc_gt.shape[1]

    TN = min(_round_up(tile_n, 128), _round_up(N, 128))
    TM = min(_round_up(tile_m, 128), _round_up(M, 128))
    n_pad = _round_up(N, TN)
    m_pad = _round_up(M, TM)
    nt, mt = n_pad // TN, m_pad // TM

    p = pc_pred.astype(jnp.float32)
    g = pc_gt.astype(jnp.float32)
    pn = jnp.sum(p * p, axis=-1)                          # (B, N)
    gn = jnp.sum(g * g, axis=-1)                          # (B, M)

    # Augmented, lane-dense layouts (coords on sublanes, points on lanes).
    #   pred sublanes: [-2x, -2y, -2z, ||p||^2, 1, 0, 0, 0]   (padded: [0,0,0,BIG,1,...])
    #   gt   sublanes: [  x,   y,   z,       1, ||g||^2, 0,0,0] (padded: [0,0,0,1,BIG,...])
    # so the in-kernel matmul emits d2 directly and padded points never win a min.
    p8 = jnp.zeros((B, 8, n_pad), jnp.float32)
    p8 = p8.at[:, 3, :].set(_BIG)
    p8 = p8.at[:, 4, :].set(1.0)
    p8 = p8.at[:, :3, :N].set(jnp.transpose(p, (0, 2, 1)) * (-2.0))
    p8 = p8.at[:, 3, :N].set(pn)

    g8 = jnp.zeros((B, 8, m_pad), jnp.float32)
    g8 = g8.at[:, 3, :].set(1.0)
    g8 = g8.at[:, 4, :].set(_BIG)
    g8 = g8.at[:, :3, :M].set(jnp.transpose(g, (0, 2, 1)))
    g8 = g8.at[:, 4, :M].set(gn)

    kernel = functools.partial(_chamfer_kernel, n_true=N, m_true=M)

    out = pl.pallas_call(
        kernel,
        out_shape=jax.ShapeDtypeStruct((B, 8, 128), jnp.float32),
        grid_spec=pltpu.PrefetchScalarGridSpec(
            num_scalar_prefetch=0,
            grid=(B, nt, mt),
            in_specs=[
                pl.BlockSpec((1, 8, TN), lambda b, i, j: (b, 0, i)),
                pl.BlockSpec((1, 8, TM), lambda b, i, j: (b, 0, j)),
            ],
            out_specs=pl.BlockSpec((1, 8, 128), lambda b, i, j: (b, 0, 0)),
            scratch_shapes=[
                pltpu.VMEM((TN, 1), jnp.float32),      # running row-min (pred -> gt)
                pltpu.VMEM((1, m_pad), jnp.float32),   # running col-min (gt -> pred)
            ],
        ),
        compiler_params=pltpu.CompilerParams(
            dimension_semantics=("parallel", "arbitrary", "arbitrary"),
            vmem_limit_bytes=32 * 1024 * 1024,
        ),
    )(p8, g8)
    return out[:, 0, 0]


# ----------------------------------------------------------------------------
# ChamferLoss.forward equivalent (module has no learnable parameters)
# ----------------------------------------------------------------------------
def chamfer_loss(image_pred, image_gt, **tile_kwargs):
    pc_pred = range_image_to_pointcloud(image_pred * 1.0)
    pc_gt = range_image_to_pointcloud(image_gt * 1.0)
    cd = chamfer_distance_pallas(pc_pred[:, :, :3], pc_gt[:, :, :3], **tile_kwargs)
    return jnp.mean(cd)


def _chamfer_loss_ref(image_pred, image_gt):
    """Pure-JAX reference for correctness check."""
    pa = range_image_to_pointcloud(image_pred)[:, :, :3]
    pb = range_image_to_pointcloud(image_gt)[:, :, :3]
    d = jnp.sum((pa[:, :, None, :] - pb[:, None, :, :]) ** 2, axis=-1)
    return jnp.mean(jnp.min(d, axis=2).mean(axis=1) + jnp.min(d, axis=1).mean(axis=1))


if __name__ == "__main__":
    key = jax.random.PRNGKey(0)
    k1, k2, k3, k4 = jax.random.split(key, 4)

    # Case 1: B=2, channels (range, intensity), 8x16 image -> 128 points/cloud.
    B, C, H, W = 2, 2, 8, 16
    img_p = jax.random.uniform(k1, (B, C, H, W), jnp.float32, minval=1.0, maxval=10.0)
    img_g = jax.random.uniform(k2, (B, C, H, W), jnp.float32, minval=1.0, maxval=10.0)
    loss = jax.block_until_ready(jax.jit(chamfer_loss)(img_p, img_g))
    ref = _chamfer_loss_ref(img_p, img_g)
    np.testing.assert_allclose(np.asarray(loss), np.asarray(ref), rtol=2e-3, atol=1e-2)

    # Case 2: non-multiple-of-128 clouds (12x25 -> 300 points) with tiny tiles to
    # exercise the multi-tile grid, the running-min scratches and padded-point masking.
    B2, H2, W2 = 2, 12, 25
    img_p2 = jax.random.uniform(k3, (B2, C, H2, W2), jnp.float32, minval=1.0, maxval=10.0)
    img_g2 = jax.random.uniform(k4, (B2, C, H2, W2), jnp.float32, minval=1.0, maxval=10.0)
    small_tiles = jax.jit(functools.partial(chamfer_loss, tile_n=128, tile_m=128))
    loss2 = jax.block_until_ready(small_tiles(img_p2, img_g2))
    ref2 = _chamfer_loss_ref(img_p2, img_g2)
    np.testing.assert_allclose(np.asarray(loss2), np.asarray(ref2), rtol=2e-3, atol=1e-2)

    print("KERNEL_OK")
</pallas_src>

<mosaic_0001>
module attributes {stable_mosaic.version = 11 : i64} {
  func.func @_chamfer_kernel(%arg0: i32, %arg1: i32, %arg2: i32, %arg3: memref<1x8x128xf32, #tpu.memory_space<vmem>>, %arg4: memref<1x8x128xf32, #tpu.memory_space<vmem>>, %arg5: memref<1x8x128xf32, #tpu.memory_space<vmem>>, %arg6: memref<128x1xf32, #tpu.memory_space<vmem>>, %arg7: memref<1x128xf32, #tpu.memory_space<vmem>>) attributes {dimension_semantics = [#tpu.dimension_semantics<parallel>, #tpu.dimension_semantics<arbitrary>, #tpu.dimension_semantics<arbitrary>], iteration_bounds = array<i64: 2, 1, 1>, scalar_prefetch = 0 : i64, scratch_operands = 2 : i64, tpu.core_type = #tpu.core_type<tc>, window_params = [{transform_indices = @transform_0, window_bounds = array<i64: 1, 8, 128>}, {transform_indices = @transform_1, window_bounds = array<i64: 1, 8, 128>}, {transform_indices = @transform_2, window_bounds = array<i64: 1, 8, 128>}]} {
    %c0_i32 = arith.constant 0 : i32
    %0 = arith.cmpi eq, %arg1, %c0_i32 : i32
    %c0_i32_0 = arith.constant 0 : i32
    %1 = arith.cmpi eq, %arg2, %c0_i32_0 : i32
    %2 = arith.andi %0, %1 : i1
    %3 = arith.extui %2 : i1 to i32
    %c0_i32_1 = arith.constant 0 : i32
    %4 = arith.cmpi ne, %3, %c0_i32_1 : i32
    scf.if %4 {
      %cst_23 = arith.constant 0.000000e+00 : f32
      %36 = vector.broadcast %cst_23 : f32 to vector<1x8x128xf32>
      %c0_24 = arith.constant 0 : index
      %c0_25 = arith.constant 0 : index
      %c0_26 = arith.constant 0 : index
      %37 = vector.load %arg5[%c0_24, %c0_25, %c0_26] : memref<1x8x128xf32, #tpu.memory_space<vmem>>, vector<1x8x128xf32>
      tpu.vector_store %arg5[%c0_24, %c0_25, %c0_26], %36 {strides = array<i32>} : memref<1x8x128xf32, #tpu.memory_space<vmem>>, vector<1x8x128xf32>,
    } else {
    }
    %c0 = arith.constant 0 : index
    %c0_2 = arith.constant 0 : index
    %c0_3 = arith.constant 0 : index
    %5 = vector.load %arg3[%c0, %c0_2, %c0_3] : memref<1x8x128xf32, #tpu.memory_space<vmem>>, vector<1x8x128xf32>
    %6 = vector.shape_cast %5 : vector<1x8x128xf32> to vector<8x128xf32>
    %c0_4 = arith.constant 0 : index
    %c0_5 = arith.constant 0 : index
    %c0_6 = arith.constant 0 : index
    %7 = vector.load %arg4[%c0_4, %c0_5, %c0_6] : memref<1x8x128xf32, #tpu.memory_space<vmem>>, vector<1x8x128xf32>
    %8 = vector.shape_cast %7 : vector<1x8x128xf32> to vector<8x128xf32>
    %cst = arith.constant dense<0.000000e+00> : vector<128x128xf32>
    %9 = tpu.matmul %6, %8, %cst {dimension_numbers = #tpu.dot_dimension_numbers<[0], [0], [1], [1], [0, 1, 1, 1], [], []>} : vector<8x128xf32>, vector<8x128xf32>, vector<128x128xf32> -> vector<128x128xf32>
    %c0_i32_7 = arith.constant 0 : i32
    %10 = arith.cmpi eq, %arg2, %c0_i32_7 : i32
    %11 = arith.extui %10 : i1 to i32
    %c0_i32_8 = arith.constant 0 : i32
    %12 = arith.cmpi ne, %11, %c0_i32_8 : i32
    scf.if %12 {
      %cst_23 = arith.constant 0x7F800000 : f32
      %36 = vector.broadcast %cst_23 : f32 to vector<128x1xf32>
      %c0_24 = arith.constant 0 : index
      %c0_25 = arith.constant 0 : index
      %37 = vector.load %arg6[%c0_24, %c0_25] : memref<128x1xf32, #tpu.memory_space<vmem>>, vector<128x1xf32>
      tpu.vector_store %arg6[%c0_24, %c0_25], %36 {strides = array<i32>} : memref<128x1xf32, #tpu.memory_space<vmem>>, vector<128x1xf32>,
    } else {
    }
    %c0_9 = arith.constant 0 : index
    %c0_10 = arith.constant 0 : index
    %13 = vector.load %arg6[%c0_9, %c0_10] : memref<128x1xf32, #tpu.memory_space<vmem>>, vector<128x1xf32>
    %cst_11 = arith.constant dense<0x7F800000> : vector<128xf32>
    %14 = vector.multi_reduction <minimumf>, %9, %cst_11 [1] : vector<128x128xf32> to vector<128xf32>
    %15 = vector.shape_cast %14 : vector<128xf32> to vector<128x1xf32>
    %16 = arith.minimumf %13, %15 : vector<128x1xf32>
    %c0_12 = arith.constant 0 : index
    %c0_13 = arith.constant 0 : index
    %17 = vector.load %arg6[%c0_12, %c0_13] : memref<128x1xf32, #tpu.memory_space<vmem>>, vector<128x1xf32>
    tpu.vector_store %arg6[%c0_12, %c0_13], %16 {strides = array<i32>} : memref<128x1xf32, #tpu.memory_space<vmem>>, vector<128x1xf32>,
    %c128_i32 = arith.constant 128 : i32
    %18 = arith.muli %arg2, %c128_i32 : i32
    %19 = tpu.assume_multiple %18, 128 : i32
    %c0_i32_14 = arith.constant 0 : i32
    %20 = arith.cmpi eq, %arg1, %c0_i32_14 : i32
    %21 = arith.extui %20 : i1 to i32
    %c0_i32_15 = arith.constant 0 : i32
    %22 = arith.cmpi ne, %21, %c0_i32_15 : i32
    scf.if %22 {
      %cst_23 = arith.constant 0x7F800000 : f32
      %36 = vector.broadcast %cst_23 : f32 to vector<1x128xf32>
      %c0_24 = arith.constant 0 : index
      %37 = arith.index_cast %19 : i32 to index
      %38 = vector.load %arg7[%c0_24, %37] : memref<1x128xf32, #tpu.memory_space<vmem>>, vector<1x128xf32>
      tpu.vector_store %arg7[%c0_24, %37], %36 {strides = array<i32>} : memref<1x128xf32, #tpu.memory_space<vmem>>, vector<1x128xf32>,
    } else {
    }
    %c0_16 = arith.constant 0 : index
    %23 = arith.index_cast %19 : i32 to index
    %24 = vector.load %arg7[%c0_16, %23] : memref<1x128xf32, #tpu.memory_space<vmem>>, vector<1x128xf32>
    %cst_17 = arith.constant dense<0x7F800000> : vector<128xf32>
    %25 = vector.multi_reduction <minimumf>, %9, %cst_17 [0] : vector<128x128xf32> to vector<128xf32>
    %26 = vector.shape_cast %25 : vector<128xf32> to vector<1x128xf32>
    %27 = arith.minimumf %24, %26 : vector<1x128xf32>
    %c0_18 = arith.constant 0 : index
    %28 = arith.index_cast %19 : i32 to index
    %29 = vector.load %arg7[%c0_18, %28] : memref<1x128xf32, #tpu.memory_space<vmem>>, vector<1x128xf32>
    tpu.vector_store %arg7[%c0_18, %28], %27 {strides = array<i32>} : memref<1x128xf32, #tpu.memory_space<vmem>>, vector<1x128xf32>,
    %c0_i32_19 = arith.constant 0 : i32
    %30 = arith.cmpi eq, %arg2, %c0_i32_19 : i32
    %31 = arith.extui %30 : i1 to i32
    %c0_i32_20 = arith.constant 0 : i32
    %32 = arith.cmpi ne, %31, %c0_i32_20 : i32
    scf.if %32 {
      %c0_23 = arith.constant 0 : index
      %c0_24 = arith.constant 0 : index
      %36 = vector.load %arg6[%c0_23, %c0_24] : memref<128x1xf32, #tpu.memory_space<vmem>>, vector<128x1xf32>
      %cst_25 = arith.constant 0.000000e+00 : f32
      %37 = vector.broadcast %cst_25 : f32 to vector<128x1xf32>
      %38 = arith.maximumf %36, %37 : vector<128x1xf32>
      %39 = tpu.iota {dimensions = array<i32: 0>} : vector<128x1xi32>
      %c128_i32_26 = arith.constant 128 : i32
      %40 = arith.muli %arg1, %c128_i32_26 : i32
      %41 = vector.broadcast %40 : i32 to vector<128x1xi32>
      %42 = arith.addi %39, %41 : vector<128x1xi32>
      %c128_i32_27 = arith.constant 128 : i32
      %43 = vector.broadcast %c128_i32_27 : i32 to vector<128x1xi32>
      %44 = arith.cmpi slt, %42, %43 : vector<128x1xi32>
      %cst_28 = arith.constant 0.000000e+00 : f32
      %45 = vector.broadcast %cst_28 : f32 to vector<128x1xf32>
      %46 = arith.select %44, %38, %45 : vector<128x1xi1>, vector<128x1xf32>
      %c0_29 = arith.constant 0 : index
      %c0_30 = arith.constant 0 : index
      %c0_31 = arith.constant 0 : index
      %47 = vector.load %arg5[%c0_29, %c0_30, %c0_31] : memref<1x8x128xf32, #tpu.memory_space<vmem>>, vector<1x8x128xf32>
      %48 = vector.shape_cast %46 : vector<128x1xf32> to vector<1x128x1xf32>
      %cst_32 = arith.constant dense<0.000000e+00> : vector<1xf32>
      %49 = vector.multi_reduction <add>, %48, %cst_32 [1, 2] : vector<1x128x1xf32> to vector<1xf32>
      %50 = vector.shape_cast %49 : vector<1xf32> to vector<1x1x1xf32>
      %51 = vector.extract %50[0, 0, 0] : f32 from vector<1x1x1xf32>
      %cst_33 = arith.constant 7.812500e-03 : f32
      %52 = arith.mulf %51, %cst_33 : f32
      %53 = vector.broadcast %52 : f32 to vector<1x8x128xf32>
      %54 = arith.addf %47, %53 : vector<1x8x128xf32>
      %c0_34 = arith.constant 0 : index
      %c0_35 = arith.constant 0 : index
      %c0_36 = arith.constant 0 : index
      %55 = vector.load %arg5[%c0_34, %c0_35, %c0_36] : memref<1x8x128xf32, #tpu.memory_space<vmem>>, vector<1x8x128xf32>
      tpu.vector_store %arg5[%c0_34, %c0_35, %c0_36], %54 {strides = array<i32>} : memref<1x8x128xf32, #tpu.memory_space<vmem>>, vector<1x8x128xf32>,
    } else {
    }
    %c0_i32_21 = arith.constant 0 : i32
    %33 = arith.cmpi eq, %arg1, %c0_i32_21 : i32
    %34 = arith.extui %33 : i1 to i32
    %c0_i32_22 = arith.constant 0 : i32
    %35 = arith.cmpi ne, %34, %c0_i32_22 : i32
    scf.if %35 {
      %c0_23 = arith.constant 0 : index
      %36 = arith.index_cast %19 : i32 to index
      %37 = vector.load %arg7[%c0_23, %36] : memref<1x128xf32, #tpu.memory_space<vmem>>, vector<1x128xf32>
      %cst_24 = arith.constant 0.000000e+00 : f32
      %38 = vector.broadcast %cst_24 : f32 to vector<1x128xf32>
      %39 = arith.maximumf %37, %38 : vector<1x128xf32>
      %40 = tpu.iota {dimensions = array<i32: 1>} : vector<1x128xi32>
      %41 = vector.broadcast %19 : i32 to vector<1x128xi32>
      %42 = arith.addi %40, %41 : vector<1x128xi32>
      %c128_i32_25 = arith.constant 128 : i32
      %43 = vector.broadcast %c128_i32_25 : i32 to vector<1x128xi32>
      %44 = arith.cmpi slt, %42, %43 : vector<1x128xi32>
      %cst_26 = arith.constant 0.000000e+00 : f32
      %45 = vector.broadcast %cst_26 : f32 to vector<1x128xf32>
      %46 = arith.select %44, %39, %45 : vector<1x128xi1>, vector<1x128xf32>
      %c0_27 = arith.constant 0 : index
      %c0_28 = arith.constant 0 : index
      %c0_29 = arith.constant 0 : index
      %47 = vector.load %arg5[%c0_27, %c0_28, %c0_29] : memref<1x8x128xf32, #tpu.memory_space<vmem>>, vector<1x8x128xf32>
      %48 = vector.shape_cast %46 : vector<1x128xf32> to vector<1x1x128xf32>
      %cst_30 = arith.constant dense<0.000000e+00> : vector<1xf32>
      %49 = vector.multi_reduction <add>, %48, %cst_30 [1, 2] : vector<1x1x128xf32> to vector<1xf32>
      %50 = vector.shape_cast %49 : vector<1xf32> to vector<1x1x1xf32>
      %51 = vector.extract %50[0, 0, 0] : f32 from vector<1x1x1xf32>
      %cst_31 = arith.constant 7.812500e-03 : f32
      %52 = arith.mulf %51, %cst_31 : f32
      %53 = vector.broadcast %52 : f32 to vector<1x8x128xf32>
      %54 = arith.addf %47, %53 : vector<1x8x128xf32>
      %c0_32 = arith.constant 0 : index
      %c0_33 = arith.constant 0 : index
      %c0_34 = arith.constant 0 : index
      %55 = vector.load %arg5[%c0_32, %c0_33, %c0_34] : memref<1x8x128xf32, #tpu.memory_space<vmem>>, vector<1x8x128xf32>
      tpu.vector_store %arg5[%c0_32, %c0_33, %c0_34], %54 {strides = array<i32>} : memref<1x8x128xf32, #tpu.memory_space<vmem>>, vector<1x8x128xf32>,
    } else {
    }
    return
  }
  func.func @transform_0(%arg0: i32, %arg1: i32, %arg2: i32) -> (i32, i32, i32) {
    %c0_i32 = arith.constant 0 : i32
    %c0_i32_0 = arith.constant 0 : i32
    return %arg0, %c0_i32, %arg1 : i32, i32, i32
  }
  func.func @transform_1(%arg0: i32, %arg1: i32, %arg2: i32) -> (i32, i32, i32) {
    %c0_i32 = arith.constant 0 : i32
    %c0_i32_0 = arith.constant 0 : i32
    return %arg0, %c0_i32, %arg2 : i32, i32, i32
  }
  func.func @transform_2(%arg0: i32, %arg1: i32, %arg2: i32) -> (i32, i32, i32) {
    %c0_i32 = arith.constant 0 : i32
    %c0_i32_0 = arith.constant 0 : i32
    %c0_i32_1 = arith.constant 0 : i32
    return %arg0, %c0_i32, %c0_i32_0 : i32, i32, i32
  }
}

</mosaic_0001>

<llo_original>
// kernel: chamfer_loss.1
$region0: #{chamfer_loss.1}
  #allocation0 [shape = 'u32[]', space=smem, size = 0x4, offset = 0x4, fixed_abs, tag = 'smem constant byte address 0x4 - core index']
  #allocation1 [shape = 'u32[144,128]{1,0:T(1,128)}', space=vmem, size = 0x12000, scoped, tag = 'internal scratch']
  #allocation2 [shape = 'f32[128,1]{1,0:T(8,128)}', space=vmem, size = 0x10000, scoped, tag = 'scratch operand']
  #allocation3 [shape = 'f32[1,128]{1,0:T(1,128)}', space=vmem, size = 0x200, scoped, tag = 'scratch operand']
  %s0 = inlined_call_operand.vmem [shape: f32[2,8,128], index: 0, kind: input, shape index: {}]
  %s1 = inlined_call_operand.vmem [shape: f32[2,8,128], index: 1, kind: input, shape index: {}]
  %s2 = inlined_call_operand.vmem [shape: f32[2,8,128], index: 2, kind: output, shape index: {}]
  %s3 = sld [smem:[#allocation0]]
  $region61: #{chamfer_loss.1} parent=0
    _
  %s5 = ssub.s32 1, %s3
  %s6 = scalar_select 0, %s5, %s3
  loop: start=0, step=1, limit=4
  $region2: #{chamfer_loss.1} parent=0 // loop_pre_header
    _
  $region3: #{chamfer_loss.1} parent=0 // loop_header
    %s8 = sphi 0, %s12
    %p9 = scmp.ge.s32.totalorder %s8, 4
    %s15 = sphi 0, %s34
    %s16 = sphi 0, %s30
    %s17 = sphi 0, %s26
    %s18 = sphi 0, %s15
    %s19 = sphi 0, %s16
    %s20 = sphi 0, %s17
    %s21 = sphi 0, %s18
    %s22 = sphi 0, %s19
    %s23 = sphi 0, %s20
    %s39 = sphi 0, %s41
    %s42 = sphi 0, %s39
    %s43 = sphi 0, %s42
    %s59 = sphi 0, %s43
    %s67 = sphi 0, %s69
    %s70 = sphi 0, %s67
    %s71 = sphi 0, %s70
    %s87 = sphi 0, %s71
    %s93 = sphi 0, %s95
    %s96 = sphi 0, %s93
    %s97 = sphi 0, %s96
    %s113 = sphi 0, %s97
  $region4: #{chamfer_loss.1} parent=0 // loop_header_branch
    %11 = sbr.rel (%p9) target = $region8
  $region5: #{chamfer_loss.1} parent=0 // loop_body
    %s13 = ssub.s32 %s8, 1
    %s14 = ssub.s32 %s8, 2
    %s24 = sadd.s32 1, %s17
    %p25 = scmp.ge.s32.totalorder %s24, 1
    %s26 = scalar_select %p25, 0, %s24
    %s27 = sadd.s32 1, %s16
    %s28 = scalar_select %p25, %s27, %s16
    %p29 = scmp.ge.s32.totalorder %s28, 1
    %s30 = scalar_select %p29, 0, %s28
    %s31 = sadd.s32 1, %s15
    %s32 = scalar_select %p29, %s31, %s15
    %p33 = scmp.ge.s32.totalorder %s32, 2
    %s34 = scalar_select %p33, 0, %s32
    %s35 = ssub.s32 %s15, %s34
    %s36 = ssub.s32 %s16, %s30
    %s37 = sor.u32 %s35, %s36
    %p38 = scmp.eq.s32.totalorder %s37, 0
    %s40 = sadd.s32 %s39, 1
    %s41 = scalar_select %p38, %s39, %s40
    %p44 = pneg %p38
    %p45 = scmp.eq.s32.totalorder %s8, 1
    %p46 = por %p44, %p45
    %p47 = scmp.ne.s32.totalorder %s39, %s42
    %p48 = scmp.eq.s32.totalorder %s8, 0
    %p49 = por %p47, %p48
    %p50 = scmp.ne.s32.totalorder %s39, %s42
    %p51 = scmp.eq.s32.totalorder %s13, 1
    %p52 = por %p50, %p51
    %p53 = scmp.ne.s32.totalorder %s42, %s43
    %p54 = scmp.eq.s32.totalorder %s13, 0
    %p55 = por %p53, %p54
    %p56 = scmp.ne.s32.totalorder %s42, %s43
    %p57 = scmp.eq.s32.totalorder %s14, 1
    %p58 = por %p56, %p57
    %p60 = scmp.ne.s32.totalorder %s43, %s59
    %p61 = scmp.eq.s32.totalorder %s14, 0
    %p62 = por %p60, %p61
    %s63 = ssub.s32 %s15, %s34
    %s64 = ssub.s32 %s17, %s26
    %s65 = sor.u32 %s63, %s64
    %p66 = scmp.eq.s32.totalorder %s65, 0
    %s68 = sadd.s32 %s67, 1
    %s69 = scalar_select %p66, %s67, %s68
    %p72 = pneg %p66
    %p73 = scmp.eq.s32.totalorder %s8, 1
    %p74 = por %p72, %p73
    %p75 = scmp.ne.s32.totalorder %s67, %s70
    %p76 = scmp.eq.s32.totalorder %s8, 0
    %p77 = por %p75, %p76
    %p78 = scmp.ne.s32.totalorder %s67, %s70
    %p79 = scmp.eq.s32.totalorder %s13, 1
    %p80 = por %p78, %p79
    %p81 = scmp.ne.s32.totalorder %s70, %s71
    %p82 = scmp.eq.s32.totalorder %s13, 0
    %p83 = por %p81, %p82
    %p84 = scmp.ne.s32.totalorder %s70, %s71
    %p85 = scmp.eq.s32.totalorder %s14, 1
    %p86 = por %p84, %p85
    %p88 = scmp.ne.s32.totalorder %s71, %s87
    %p89 = scmp.eq.s32.totalorder %s14, 0
    %p90 = por %p88, %p89
    %s91 = ssub.s32 %s15, %s34
    %p92 = scmp.eq.s32.totalorder %s91, 0
    %s94 = sadd.s32 %s93, 1
    %s95 = scalar_select %p92, %s93, %s94
    %p98 = pneg %p92
    %p99 = scmp.eq.s32.totalorder %s8, 1
    %p100 = por %p98, %p99
    %p101 = scmp.ne.s32.totalorder %s93, %s96
    %p102 = scmp.eq.s32.totalorder %s8, 0
    %p103 = por %p101, %p102
    %p104 = scmp.ne.s32.totalorder %s93, %s96
    %p105 = scmp.eq.s32.totalorder %s13, 1
    %p106 = por %p104, %p105
    %p107 = scmp.ne.s32.totalorder %s96, %s97
    %p108 = scmp.eq.s32.totalorder %s13, 0
    %p109 = por %p107, %p108
    %p110 = scmp.ne.s32.totalorder %s96, %s97
    %p111 = scmp.eq.s32.totalorder %s14, 1
    %p112 = por %p110, %p111
    %p114 = scmp.ne.s32.totalorder %s97, %s113
    %p115 = scmp.eq.s32.totalorder %s14, 0
    %p116 = por %p114, %p115
    %p117 = scmp.le.s32.totalorder 1, %s8
    %p118 = scmp.lt.s32.totalorder %s8, 3
    %p119 = pnand %p117, %p118
    %p120 = pneg %p119
    // Predicated region
    $region9: #{chamfer_loss.1} parent=5 // pred_check
      _
    $region10: #{chamfer_loss.1} parent=5 // pred_check_branch
      %122 = sbr.rel (%p119) target = $region12
    $region11: #{chamfer_loss.1} parent=5 // pred_region
      %s123 = ssub.s32 %s8, 1
    $region12: #{chamfer_loss.1} parent=5 // pred_fallthru
      _
    %p124 = scmp.lt.s32.totalorder %s8, 2
    // Predicated region
    $region13: #{chamfer_loss.1} parent=5 // pred_check
      %p125 = pneg %p124
    $region14: #{chamfer_loss.1} parent=5 // pred_check_branch
      %127 = sbr.rel (%p125) target = $region16
    $region15: #{chamfer_loss.1} parent=5 // pred_region
      // Predicated region
      $region17: #{chamfer_loss.1} parent=15 // pred_check
        %p128 = pneg %p49
      $region18: #{chamfer_loss.1} parent=15 // pred_check_branch
        %130 = sbr.rel (%p128) target = $region20
      $region19: #{chamfer_loss.1} parent=15 // pred_region
        %p131 = scmp.lt.s32.totalorder %s15, 1
        %s132 = scalar_select %p131, %s15, 1
        %p133 = scmp.lt.s32.totalorder %s16, 0
        %s134 = scalar_select %p133, %s16, 0
        %s135 = sadd.s32 %s134, %s132
        %s136 = smul.addr %s135, 8
        %s137 = scalar_lea.vmem %s0, %s136
      $region20: #{chamfer_loss.1} parent=15 // pred_fallthru
        _
      // Predicated region
      $region21: #{chamfer_loss.1} parent=15 // pred_check
        %p138 = pneg %p77
      $region22: #{chamfer_loss.1} parent=15 // pred_check_branch
        %140 = sbr.rel (%p138) target = $region24
      $region23: #{chamfer_loss.1} parent=15 // pred_region
        %p141 = scmp.lt.s32.totalorder %s15, 1
        %s142 = scalar_select %p141, %s15, 1
        %p143 = scmp.lt.s32.totalorder %s17, 0
        %s144 = scalar_select %p143, %s17, 0
        %s145 = sadd.s32 %s144, %s142
        %s146 = smul.addr %s145, 8
        %s147 = scalar_lea.vmem %s1, %s146
      $region24: #{chamfer_loss.1} parent=15 // pred_fallthru
        _
    $region16: #{chamfer_loss.1} parent=5 // pred_fallthru
      _
    %p148 = scmp.le.s32.totalorder 1, %s8
    %p149 = scmp.lt.s32.totalorder %s8, 3
    %p150 = pnand %p148, %p149
    %p151 = pneg %p150
    // Predicated region
    $region25: #{chamfer_loss.1} parent=5 // pred_check
      _
    $region26: #{chamfer_loss.1} parent=5 // pred_check_branch
      %153 = sbr.rel (%p150) target = $region28
    $region27: #{chamfer_loss.1} parent=5 // pred_region
      %s154 = ssub.s32 %s8, 1
      %p155 = scmp.lt.s32.totalorder %s18, 1
      %s156 = scalar_select %p155, %s18, 1
      %p157 = scmp.lt.s32.totalorder %s19, 0
      %s158 = scalar_select %p157, %s19, 0
      %s159 = sadd.s32 %s158, %s156
      %s160 = smul.addr %s159, 8
      %s161 = scalar_lea.vmem %s0, %s160
      %p162 = pneg %p55
      %p163 = pneg %p52
      %p164 = scmp.lt.s32.totalorder %s18, 1
      %s165 = scalar_select %p164, %s18, 1
      %p166 = scmp.lt.s32.totalorder %s20, 0
      %s167 = scalar_select %p166, %s20, 0
      %s168 = sadd.s32 %s167, %s165
      %s169 = smul.addr %s168, 8
      %s170 = scalar_lea.vmem %s1, %s169
      %p171 = pneg %p83
      %p172 = pneg %p80
      %p173 = pneg %p109
      %p174 = pneg %p106
      %p175 = scmp.lt.s32.totalorder %s18, 1
      %s176 = scalar_select %p175, %s18, 1
      %s177 = smul.addr %s176, 8
      %s178 = scalar_lea.vmem %s2, %s177
      %p179 = scmp.lt.s32.totalorder %s18, 1
      %s180 = scalar_select %p179, %s18, 1
      %p181 = scmp.lt.s32.totalorder %s19, 0
      %s182 = scalar_select %p181, %s19, 0
      %s183 = sadd.s32 %s182, %s180
      %s184 = smul.addr %s183, 8
      %s185 = scalar_lea.vmem %s0, %s184
      %p186 = scmp.lt.s32.totalorder %s18, 1
      %s187 = scalar_select %p186, %s18, 1
      %p188 = scmp.lt.s32.totalorder %s20, 0
      %s189 = scalar_select %p188, %s20, 0
      %s190 = sadd.s32 %s189, %s187
      %s191 = smul.addr %s190, 8
      %s192 = scalar_lea.vmem %s1, %s191
      %p193 = scmp.lt.s32.totalorder %s18, 1
      %s194 = scalar_select %p193, %s18, 1
      %s195 = smul.addr %s194, 8
      %s196 = scalar_lea.vmem %s2, %s195
      %p197 = scmp.eq.s32.totalorder %s19, 0
      %p198 = scmp.eq.s32.totalorder %s20, 0
      %p199 = pnand %p197, %p198
      %p200 = pneg %p199
      // Predicated region
      $region29: #{chamfer_loss.1} parent=27 // pred_check
        _
      $region30: #{chamfer_loss.1} parent=27 // pred_check_branch
        %202 = sbr.rel (%p199) target = $region32
      $region31: #{chamfer_loss.1} parent=27 // pred_region
        %203 = vst [vmem:[%s196] sm:$0xff] 0.0
      $region32: #{chamfer_loss.1} parent=27 // pred_fallthru
        _
      %v204 = vld [vmem:[%s185] sm:$0xff]
      %v205 = vld [vmem:[%s192] sm:$0xff]
      %206 = vxpose.xlu0.b32.start [1/16] %v204, 128
      %207 = vxpose.xlu0.b32.cont [2/16] 0.0, 128
      %208 = vxpose.xlu0.b32.cont [3/16] 0.0, 128
      %209 = vxpose.xlu0.b32.cont [4/16] 0.0, 128
      %210 = vxpose.xlu0.b32.cont [5/16] 0.0, 128
      %211 = vxpose.xlu0.b32.cont [6/16] 0.0, 128
      %212 = vxpose.xlu0.b32.cont [7/16] 0.0, 128
      %213 = vxpose.xlu0.b32.cont [8/16] 0.0, 128
      %214 = vxpose.xlu0.b32.cont [9/16] 0.0, 128
      %215 = vxpose.xlu0.b32.cont [10/16] 0.0, 128
      %216 = vxpose.xlu0.b32.cont [11/16] 0.0, 128
      %217 = vxpose.xlu0.b32.cont [12/16] 0.0, 128
      %218 = vxpose.xlu0.b32.cont [13/16] 0.0, 128
      %219 = vxpose.xlu0.b32.cont [14/16] 0.0, 128
      %220 = vxpose.xlu0.b32.cont [15/16] 0.0, 128
      %221 = vxpose.xlu0.b32.end [16/16] 0.0, 128
      %v222 = vpop.trf.xlu0
      %v223 = vpop.trf.xlu0
      %v224 = vpop.trf.xlu0
      %v225 = vpop.trf.xlu0
      %v226 = vpop.trf.xlu0
      %v227 = vpop.trf.xlu0
      %v228 = vpop.trf.xlu0
      %v229 = vpop.trf.xlu0
      %v230 = vpop.trf.xlu0
      %v231 = vpop.trf.xlu0
      %v232 = vpop.trf.xlu0
      %v233 = vpop.trf.xlu0
      %v234 = vpop.trf.xlu0
      %v235 = vpop.trf.xlu0
      %v236 = vpop.trf.xlu0
      %v237 = vpop.trf.xlu0
      %vm238 = vcmask 64512
      %v240 = vsel %vm238, %v222, 0
      %v243 = vsel %vm238, %v223, 0
      %v246 = vsel %vm238, %v224, 0
      %v249 = vsel %vm238, %v225, 0
      %v252 = vsel %vm238, %v226, 0
      %v255 = vsel %vm238, %v227, 0
      %v258 = vsel %vm238, %v228, 0
      %v261 = vsel %vm238, %v229, 0
      %v264 = vsel %vm238, %v230, 0
      %v267 = vsel %vm238, %v231, 0
      %v270 = vsel %vm238, %v232, 0
      %v273 = vsel %vm238, %v233, 0
      %v276 = vsel %vm238, %v234, 0
      %v279 = vsel %vm238, %v235, 0
      %v282 = vsel %vm238, %v236, 0
      %v285 = vsel %vm238, %v237, 0
      %287 = vmatprep.subr.mxu0 0.0
      %288 = vmatpush1.msra.mxu0 0.0
      %289 = vmatprep.subr.mxu0 0.0
      %290 = vmatpush1.msra.mxu0 0.0
      %291 = vmatprep.subr.mxu0 0.0
      %292 = vmatpush1.msra.mxu0 0.0
      %293 = vmatprep.subr.mxu0 0.0
      %294 = vmatpush1.msra.mxu0 0.0
      %295 = vmatprep.subr.mxu0 0.0
      %296 = vmatpush1.msra.mxu0 0.0
      %297 = vmatprep.subr.mxu0 0.0
      %298 = vmatpush1.msra.mxu0 0.0
      %299 = vmatprep.subr.mxu0 0.0
      %300 = vmatpush1.msra.mxu0 0.0
      %301 = vmatprep.subr.mxu0 0.0
      %302 = vmatpush1.msra.mxu0 0.0
      %303 = vmatprep.subr.mxu0 0.0
      %304 = vmatpush1.msra.mxu0 0.0
      %305 = vmatprep.subr.mxu0 0.0
      %306 = vmatpush1.msra.mxu0 0.0
      %307 = vmatprep.subr.mxu0 0.0
      %308 = vmatpush1.msra.mxu0 0.0
      %309 = vmatprep.subr.mxu0 0.0
      %310 = vmatpush1.msra.mxu0 0.0
      %311 = vmatprep.subr.mxu0 0.0
      %312 = vmatpush1.msra.mxu0 0.0
      %313 = vmatprep.subr.mxu0 0.0
      %314 = vmatpush1.msra.mxu0 0.0
      %315 = vmatprep.subr.mxu0 0.0
      %316 = vmatpush1.msra.mxu0 0.0
      %317 = vmatprep.subr.mxu0 0.0
      %318 = vmatpush1.msra.mxu0 %v205
      %319 = vmatprep.subr.mxu0 0.0
      %320 = vmatpush2.msra.mxu0 0.0
      %321 = vmatprep.subr.mxu0 0.0
      %322 = vmatpush2.msra.mxu0 0.0
      %323 = vmatprep.subr.mxu0 0.0
      %324 = vmatpush2.msra.mxu0 0.0
      %325 = vmatprep.subr.mxu0 0.0
      %326 = vmatpush2.msra.mxu0 0.0
      %327 = vmatprep.subr.mxu0 0.0
      %328 = vmatpush2.msra.mxu0 0.0
      %329 = vmatprep.subr.mxu0 0.0
      %330 = vmatpush2.msra.mxu0 0.0
      %331 = vmatprep.subr.mxu0 0.0
      %332 = vmatpush2.msra.mxu0 0.0
      %333 = vmatprep.subr.mxu0 0.0
      %334 = vmatpush2.msra.mxu0 0.0
      %335 = vmatprep.subr.mxu0 0.0
      %336 = vmatpush2.msra.mxu0 0.0
      %337 = vmatprep.subr.mxu0 0.0
      %338 = vmatpush2.msra.mxu0 0.0
      %339 = vmatprep.subr.mxu0 0.0
      %340 = vmatpush2.msra.mxu0 0.0
      %341 = vmatprep.subr.mxu0 0.0
      %342 = vmatpush2.msra.mxu0 0.0
      %343 = vmatprep.subr.mxu0 0.0
      %344 = vmatpush2.msra.mxu0 0.0
      %345 = vmatprep.subr.mxu0 0.0
      %346 = vmatpush2.msra.mxu0 0.0
      %347 = vmatprep.subr.mxu0 0.0
      %348 = vmatpush2.msra.mxu0 0.0
      %349 = vmatprep.subr.mxu0 0.0
      %350 = vmatpush2.msra.mxu0 0.0
      %351 = vmatprep.mubr.f32.mxu0 0.0
      %352 = vmatmul.mubr.f32.gmra.mxu0 %v240
      %v353 = vpop.f32.mrf.mxu0
      %v354 = vadd.f32 0.0, %v353
      %v355 = vpop.f32.mrf.mxu0
      %356 = vmatprep.mubr.f32.mxu0 0.0
      %357 = vmatmul.mubr.f32.gmra.mxu0 %v243
      %v358 = vpop.f32.mrf.mxu0
      %v359 = vadd.f32 0.0, %v358
      %v360 = vpop.f32.mrf.mxu0
      %361 = vmatprep.mubr.f32.mxu0 0.0
      %362 = vmatmul.mubr.f32.gmra.mxu0 %v246
      %v363 = vpop.f32.mrf.mxu0
      %v364 = vadd.f32 0.0, %v363
      %v365 = vpop.f32.mrf.mxu0
      %366 = vmatprep.mubr.f32.mxu0 0.0
      %367 = vmatmul.mubr.f32.gmra.mxu0 %v249
      %v368 = vpop.f32.mrf.mxu0
      %v369 = vadd.f32 0.0, %v368
      %v370 = vpop.f32.mrf.mxu0
      %371 = vmatprep.mubr.f32.mxu0 0.0
      %372 = vmatmul.mubr.f32.gmra.mxu0 %v252
      %v373 = vpop.f32.mrf.mxu0
      %v374 = vadd.f32 0.0, %v373
      %v375 = vpop.f32.mrf.mxu0
      %376 = vmatprep.mubr.f32.mxu0 0.0
      %377 = vmatmul.mubr.f32.gmra.mxu0 %v255
      %v378 = vpop.f32.mrf.mxu0
      %v379 = vadd.f32 0.0, %v378
      %v380 = vpop.f32.mrf.mxu0
      %381 = vmatprep.mubr.f32.mxu0 0.0
      %382 = vmatmul.mubr.f32.gmra.mxu0 %v258
      %v383 = vpop.f32.mrf.mxu0
      %v384 = vadd.f32 0.0, %v383
      %v385 = vpop.f32.mrf.mxu0
      %386 = vmatprep.mubr.f32.mxu0 0.0
      %387 = vmatmul.mubr.f32.gmra.mxu0 %v261
      %v388 = vpop.f32.mrf.mxu0
      %v389 = vadd.f32 0.0, %v388
      %v390 = vpop.f32.mrf.mxu0
      %391 = vmatprep.mubr.f32.mxu0 0.0
      %392 = vmatmul.mubr.f32.gmra.mxu0 %v264
      %v393 = vpop.f32.mrf.mxu0
      %v394 = vadd.f32 0.0, %v393
      %v395 = vpop.f32.mrf.mxu0
      %396 = vmatprep.mubr.f32.mxu0 0.0
      %397 = vmatmul.mubr.f32.gmra.mxu0 %v267
      %v398 = vpop.f32.mrf.mxu0
      %v399 = vadd.f32 0.0, %v398
      %v400 = vpop.f32.mrf.mxu0
      %401 = vmatprep.mubr.f32.mxu0 0.0
      %402 = vmatmul.mubr.f32.gmra.mxu0 %v270
      %v403 = vpop.f32.mrf.mxu0
      %v404 = vadd.f32 0.0, %v403
      %v405 = vpop.f32.mrf.mxu0
      %406 = vmatprep.mubr.f32.mxu0 0.0
      %407 = vmatmul.mubr.f32.gmra.mxu0 %v273
      %v408 = vpop.f32.mrf.mxu0
      %v409 = vadd.f32 0.0, %v408
      %v410 = vpop.f32.mrf.mxu0
      %411 = vmatprep.mubr.f32.mxu0 0.0
      %412 = vmatmul.mubr.f32.gmra.mxu0 %v276
      %v413 = vpop.f32.mrf.mxu0
      %v414 = vadd.f32 0.0, %v413
      %v415 = vpop.f32.mrf.mxu0
      %416 = vmatprep.mubr.f32.mxu0 0.0
      %417 = vmatmul.mubr.f32.gmra.mxu0 %v279
      %v418 = vpop.f32.mrf.mxu0
      %v419 = vadd.f32 0.0, %v418
      %v420 = vpop.f32.mrf.mxu0
      %421 = vmatprep.mubr.f32.mxu0 0.0
      %422 = vmatmul.mubr.f32.gmra.mxu0 %v282
      %v423 = vpop.f32.mrf.mxu0
      %v424 = vadd.f32 0.0, %v423
      %v425 = vpop.f32.mrf.mxu0
      %426 = vmatprep.mubr.f32.mxu0 0.0
      %427 = vmatmul.mubr.f32.gmra.mxu0 %v285
      %v428 = vpop.f32.mrf.mxu0
      %v429 = vadd.f32 0.0, %v428
      %v430 = vpop.f32.mrf.mxu0
      %431 = vdwg.mxu0
      // Predicated region
      $region33: #{chamfer_loss.1} parent=27 // pred_check
        %p432 = pneg %p198
      $region34: #{chamfer_loss.1} parent=27 // pred_check_branch
        %434 = sbr.rel (%p432) target = $region36
      $region35: #{chamfer_loss.1} parent=27 // pred_region
        %vm435 = vcmask 7168
        %436 = vst.msk [vmem:[#allocation2] sm:$0xff] %vm435, inf
        %437 = vst.msk [vmem:[#allocation2 + $0x8] sm:$0xff] %vm435, inf
        %438 = vst.msk [vmem:[#allocation2 + $0x10] sm:$0xff] %vm435, inf
        %439 = vst.msk [vmem:[#allocation2 + $0x18] sm:$0xff] %vm435, inf
        %440 = vst.msk [vmem:[#allocation2 + $0x20] sm:$0xff] %vm435, inf
        %441 = vst.msk [vmem:[#allocation2 + $0x28] sm:$0xff] %vm435, inf
        %442 = vst.msk [vmem:[#allocation2 + $0x30] sm:$0xff] %vm435, inf
        %443 = vst.msk [vmem:[#allocation2 + $0x38] sm:$0xff] %vm435, inf
        %444 = vst.msk [vmem:[#allocation2 + $0x40] sm:$0xff] %vm435, inf
        %445 = vst.msk [vmem:[#allocation2 + $0x48] sm:$0xff] %vm435, inf
        %446 = vst.msk [vmem:[#allocation2 + $0x50] sm:$0xff] %vm435, inf
        %447 = vst.msk [vmem:[#allocation2 + $0x58] sm:$0xff] %vm435, inf
        %448 = vst.msk [vmem:[#allocation2 + $0x60] sm:$0xff] %vm435, inf
        %449 = vst.msk [vmem:[#allocation2 + $0x68] sm:$0xff] %vm435, inf
        %450 = vst.msk [vmem:[#allocation2 + $0x70] sm:$0xff] %vm435, inf
        %451 = vst.msk [vmem:[#allocation2 + $0x78] sm:$0xff] %vm435, inf
      $region36: #{chamfer_loss.1} parent=27 // pred_fallthru
        _
      %v452 = vld [vmem:[#allocation2] sm:$0xff]
      %v453 = vld [vmem:[#allocation2 + $0x8] sm:$0xff]
      %v454 = vld [vmem:[#allocation2 + $0x10] sm:$0xff]
      %v455 = vld [vmem:[#allocation2 + $0x18] sm:$0xff]
      %v456 = vld [vmem:[#allocation2 + $0x20] sm:$0xff]
      %v457 = vld [vmem:[#allocation2 + $0x28] sm:$0xff]
      %v458 = vld [vmem:[#allocation2 + $0x30] sm:$0xff]
      %v459 = vld [vmem:[#allocation2 + $0x38] sm:$0xff]
      %v460 = vld [vmem:[#allocation2 + $0x40] sm:$0xff]
      %v461 = vld [vmem:[#allocation2 + $0x48] sm:$0xff]
      %v462 = vld [vmem:[#allocation2 + $0x50] sm:$0xff]
      %v463 = vld [vmem:[#allocation2 + $0x58] sm:$0xff]
      %v464 = vld [vmem:[#allocation2 + $0x60] sm:$0xff]
      %v465 = vld [vmem:[#allocation2 + $0x68] sm:$0xff]
      %v466 = vld [vmem:[#allocation2 + $0x70] sm:$0xff]
      %v467 = vld [vmem:[#allocation2 + $0x78] sm:$0xff]
      %468 = vmin.xlane.f32.xlu0 %v354
      %v469 = vpop.xlane.xlu0 %468
      %470 = vmin.xlane.f32.xlu0 %v359
      %v471 = vpop.xlane.xlu0 %470
      %472 = vmin.xlane.f32.xlu0 %v364
      %v473 = vpop.xlane.xlu0 %472
      %474 = vmin.xlane.f32.xlu0 %v369
      %v475 = vpop.xlane.xlu0 %474
      %476 = vmin.xlane.f32.xlu0 %v374
      %v477 = vpop.xlane.xlu0 %476
      %478 = vmin.xlane.f32.xlu0 %v379
      %v479 = vpop.xlane.xlu0 %478
      %480 = vmin.xlane.f32.xlu0 %v384
      %v481 = vpop.xlane.xlu0 %480
      %482 = vmin.xlane.f32.xlu0 %v389
      %v483 = vpop.xlane.xlu0 %482
      %484 = vmin.xlane.f32.xlu0 %v394
      %v485 = vpop.xlane.xlu0 %484
      %486 = vmin.xlane.f32.xlu0 %v399
      %v487 = vpop.xlane.xlu0 %486
      %488 = vmin.xlane.f32.xlu0 %v404
      %v489 = vpop.xlane.xlu0 %488
      %490 = vmin.xlane.f32.xlu0 %v409
      %v491 = vpop.xlane.xlu0 %490
      %492 = vmin.xlane.f32.xlu0 %v414
      %v493 = vpop.xlane.xlu0 %492
      %494 = vmin.xlane.f32.xlu0 %v419
      %v495 = vpop.xlane.xlu0 %494
      %496 = vmin.xlane.f32.xlu0 %v424
      %v497 = vpop.xlane.xlu0 %496
      %498 = vmin.xlane.f32.xlu0 %v429
      %v499 = vpop.xlane.xlu0 %498
      %v500 = vmin.f32 %v452, %v469
      %v501 = vmin.f32 %v453, %v471
      %v502 = vmin.f32 %v454, %v473
      %v503 = vmin.f32 %v455, %v475
      %v504 = vmin.f32 %v456, %v477
      %v505 = vmin.f32 %v457, %v479
      %v506 = vmin.f32 %v458, %v481
      %v507 = vmin.f32 %v459, %v483
      %v508 = vmin.f32 %v460, %v485
      %v509 = vmin.f32 %v461, %v487
      %v510 = vmin.f32 %v462, %v489
      %v511 = vmin.f32 %v463, %v491
      %v512 = vmin.f32 %v464, %v493
      %v513 = vmin.f32 %v465, %v495
      %v514 = vmin.f32 %v466, %v497
      %v515 = vmin.f32 %v467, %v499
      %vm516 = vcmask 7168
      %517 = vst.msk [vmem:[#allocation2] sm:$0xff] %vm516, %v500
      %518 = vst.msk [vmem:[#allocation2 + $0x8] sm:$0xff] %vm516, %v501
      %519 = vst.msk [vmem:[#allocation2 + $0x10] sm:$0xff] %vm516, %v502
      %520 = vst.msk [vmem:[#allocation2 + $0x18] sm:$0xff] %vm516, %v503
      %521 = vst.msk [vmem:[#allocation2 + $0x20] sm:$0xff] %vm516, %v504
      %522 = vst.msk [vmem:[#allocation2 + $0x28] sm:$0xff] %vm516, %v505
      %523 = vst.msk [vmem:[#allocation2 + $0x30] sm:$0xff] %vm516, %v506
      %524 = vst.msk [vmem:[#allocation2 + $0x38] sm:$0xff] %vm516, %v507
      %525 = vst.msk [vmem:[#allocation2 + $0x40] sm:$0xff] %vm516, %v508
      %526 = vst.msk [vmem:[#allocation2 + $0x48] sm:$0xff] %vm516, %v509
      %527 = vst.msk [vmem:[#allocation2 + $0x50] sm:$0xff] %vm516, %v510
      %528 = vst.msk [vmem:[#allocation2 + $0x58] sm:$0xff] %vm516, %v511
      %529 = vst.msk [vmem:[#allocation2 + $0x60] sm:$0xff] %vm516, %v512
      %530 = vst.msk [vmem:[#allocation2 + $0x68] sm:$0xff] %vm516, %v513
      %531 = vst.msk [vmem:[#allocation2 + $0x70] sm:$0xff] %vm516, %v514
      %532 = vst.msk [vmem:[#allocation2 + $0x78] sm:$0xff] %vm516, %v515
      %s533 = smul.u32 %s20, 128
      // Predicated region
      $region37: #{chamfer_loss.1} parent=27 // pred_check
        %p534 = pneg %p197
      $region38: #{chamfer_loss.1} parent=27 // pred_check_branch
        %536 = sbr.rel (%p534) target = $region40
      $region39: #{chamfer_loss.1} parent=27 // pred_region
        %s537 = sshra.s32 %s533, 7
        %s538 = sand.u32 %s533, 127
        %s539 = scalar_lea.vmem [#allocation3], %s537
        %540 = vst [vmem:[%s539] sm:$0x1] inf
      $region40: #{chamfer_loss.1} parent=27 // pred_fallthru
        _
      %s541 = sshra.s32 %s533, 7
      %s542 = sand.u32 %s533, 127
      %s543 = scalar_lea.vmem [#allocation3], %s541
      %v544 = vld [vmem:[%s543] sm:$0x1]
      %v545 = vmin.f32 %v354, %v374
      %v546 = vmin.f32 %v359, %v379
      %v547 = vmin.f32 %v364, %v384
      %v548 = vmin.f32 %v369, %v389
      %v549 = vmin.f32 %v545, %v394
      %v550 = vmin.f32 %v546, %v399
      %v551 = vmin.f32 %v547, %v404
      %v552 = vmin.f32 %v548, %v409
      %v553 = vmin.f32 %v549, %v414
      %v554 = vmin.f32 %v550, %v419
      %v555 = vmin.f32 %v551, %v424
      %v556 = vmin.f32 %v552, %v429
      %v557 = vmin.f32 %v553, %v554
      %v558 = vmin.f32 %v555, %v556
      %v559 = vmin.f32 %v557, %v558
      %v560 = vrot.slane %v559, 4
      %v561 = vmin.f32 %v559, %v560
      %v562 = vrot.slane %v561, 2
      %v563 = vmin.f32 %v561, %v562
      %v564 = vrot.slane %v563, 1
      %v565 = vmin.f32 %v563, %v564
      %v566 = vmin.f32 %v544, %v565
      %567 = vst [vmem:[%s543] sm:$0x1] %v566
      // Predicated region
      $region41: #{chamfer_loss.1} parent=27 // pred_check
        %p568 = pneg %p198
      $region42: #{chamfer_loss.1} parent=27 // pred_check_branch
        %570 = sbr.rel (%p568) target = $region44
      $region43: #{chamfer_loss.1} parent=27 // pred_region
        %v571 = vld [vmem:[#allocation2] sm:$0xff]
        %v572 = vld [vmem:[#allocation2 + $0x8] sm:$0xff]
        %v573 = vld [vmem:[#allocation2 + $0x10] sm:$0xff]
        %v574 = vld [vmem:[#allocation2 + $0x18] sm:$0xff]
        %v575 = vld [vmem:[#allocation2 + $0x20] sm:$0xff]
        %v576 = vld [vmem:[#allocation2 + $0x28] sm:$0xff]
        %v577 = vld [vmem:[#allocation2 + $0x30] sm:$0xff]
        %v578 = vld [vmem:[#allocation2 + $0x38] sm:$0xff]
        %v579 = vld [vmem:[#allocation2 + $0x40] sm:$0xff]
        %v580 = vld [vmem:[#allocation2 + $0x48] sm:$0xff]
        %v581 = vld [vmem:[#allocation2 + $0x50] sm:$0xff]
        %v582 = vld [vmem:[#allocation2 + $0x58] sm:$0xff]
        %v583 = vld [vmem:[#allocation2 + $0x60] sm:$0xff]
        %v584 = vld [vmem:[#allocation2 + $0x68] sm:$0xff]
        %v585 = vld [vmem:[#allocation2 + $0x70] sm:$0xff]
        %v586 = vld [vmem:[#allocation2 + $0x78] sm:$0xff]
        %v587 = vmax.f32 %v571, 0.0
        %v588 = vmax.f32 %v572, 0.0
        %v589 = vmax.f32 %v573, 0.0
        %v590 = vmax.f32 %v574, 0.0
        %v591 = vmax.f32 %v575, 0.0
        %v592 = vmax.f32 %v576, 0.0
        %v593 = vmax.f32 %v577, 0.0
        %v594 = vmax.f32 %v578, 0.0
        %v595 = vmax.f32 %v579, 0.0
        %v596 = vmax.f32 %v580, 0.0
        %v597 = vmax.f32 %v581, 0.0
        %v598 = vmax.f32 %v582, 0.0
        %v599 = vmax.f32 %v583, 0.0
        %v600 = vmax.f32 %v584, 0.0
        %v601 = vmax.f32 %v585, 0.0
        %v602 = vmax.f32 %v586, 0.0
        %v603 = vlaneseq
        %v604 = vshrl.u32 %v603, 7
        %v605 = vadd.s32 %v604, 8
        %v606 = vadd.s32 %v604, 16
        %v607 = vadd.s32 %v604, 24
        %v608 = vadd.s32 %v604, 32
        %v609 = vadd.s32 %v604, 40
        %v610 = vadd.s32 %v604, 48
        %v611 = vadd.s32 %v604, 56
        %v612 = vadd.s32 %v604, 64
        %v613 = vadd.s32 %v604, 72
        %v614 = vadd.s32 %v604, 80
        %v615 = vadd.s32 %v604, 88
        %v616 = vadd.s32 %v604, 96
        %v617 = vadd.s32 %v604, 104
        %v618 = vadd.s32 %v604, 112
        %v619 = vadd.s32 %v604, 120
        %s620 = smul.u32 %s19, 128
        %v621 = vstv %s620
        %v622 = vadd.s32 %v604, %v621
        %v623 = vadd.s32 %v605, %v621
        %v624 = vadd.s32 %v606, %v621
        %v625 = vadd.s32 %v607, %v621
        %v626 = vadd.s32 %v608, %v621
        %v627 = vadd.s32 %v609, %v621
        %v628 = vadd.s32 %v610, %v621
        %v629 = vadd.s32 %v611, %v621
        %v630 = vadd.s32 %v612, %v621
        %v631 = vadd.s32 %v613, %v621
        %v632 = vadd.s32 %v614, %v621
        %v633 = vadd.s32 %v615, %v621
        %v634 = vadd.s32 %v616, %v621
        %v635 = vadd.s32 %v617, %v621
        %v636 = vadd.s32 %v618, %v621
        %v637 = vadd.s32 %v619, %v621
        %vm638 = vcmp.lt.s32.totalorder %v622, 128
        %vm639 = vcmp.lt.s32.totalorder %v623, 128
        %vm640 = vcmp.lt.s32.totalorder %v624, 128
        %vm641 = vcmp.lt.s32.totalorder %v625, 128
        %vm642 = vcmp.lt.s32.totalorder %v626, 128
        %vm643 = vcmp.lt.s32.totalorder %v627, 128
        %vm644 = vcmp.lt.s32.totalorder %v628, 128
        %vm645 = vcmp.lt.s32.totalorder %v629, 128
        %vm646 = vcmp.lt.s32.totalorder %v630, 128
        %vm647 = vcmp.lt.s32.totalorder %v631, 128
        %vm648 = vcmp.lt.s32.totalorder %v632, 128
        %vm649 = vcmp.lt.s32.totalorder %v633, 128
        %vm650 = vcmp.lt.s32.totalorder %v634, 128
        %vm651 = vcmp.lt.s32.totalorder %v635, 128
        %vm652 = vcmp.lt.s32.totalorder %v636, 128
        %vm653 = vcmp.lt.s32.totalorder %v637, 128
        %v654 = vsel %vm638, %v587, 0.0
        %v655 = vsel %vm639, %v588, 0.0
        %v656 = vsel %vm640, %v589, 0.0
        %v657 = vsel %vm641, %v590, 0.0
        %v658 = vsel %vm642, %v591, 0.0
        %v659 = vsel %vm643, %v592, 0.0
        %v660 = vsel %vm644, %v593, 0.0
        %v661 = vsel %vm645, %v594, 0.0
        %v662 = vsel %vm646, %v595, 0.0
        %v663 = vsel %vm647, %v596, 0.0
        %v664 = vsel %vm648, %v597, 0.0
        %v665 = vsel %vm649, %v598, 0.0
        %v666 = vsel %vm650, %v599, 0.0
        %v667 = vsel %vm651, %v600, 0.0
        %v668 = vsel %vm652, %v601, 0.0
        %v669 = vsel %vm653, %v602, 0.0
        %v670 = vld [vmem:[%s196] sm:$0xff]
        %v671 = vsel %vm516, %v654, 0.0
        %v672 = vsel %vm516, %v655, 0.0
        %v673 = vadd.f32 %v671, %v672
        %v674 = vsel %vm516, %v656, 0.0
        %v675 = vadd.f32 %v673, %v674
        %v676 = vsel %vm516, %v657, 0.0
        %v677 = vadd.f32 %v675, %v676
        %v678 = vsel %vm516, %v658, 0.0
        %v679 = vadd.f32 %v677, %v678
        %v680 = vsel %vm516, %v659, 0.0
        %v681 = vadd.f32 %v679, %v680
        %v682 = vsel %vm516, %v660, 0.0
        %v683 = vadd.f32 %v681, %v682
        %v684 = vsel %vm516, %v661, 0.0
        %v685 = vadd.f32 %v683, %v684
        %v686 = vsel %vm516, %v662, 0.0
        %v687 = vadd.f32 %v685, %v686
        %v688 = vsel %vm516, %v663, 0.0
        %v689 = vadd.f32 %v687, %v688
        %v690 = vsel %vm516, %v664, 0.0
        %v691 = vadd.f32 %v689, %v690
        %v692 = vsel %vm516, %v665, 0.0
        %v693 = vadd.f32 %v691, %v692
        %v694 = vsel %vm516, %v666, 0.0
        %v695 = vadd.f32 %v693, %v694
        %v696 = vsel %vm516, %v667, 0.0
        %v697 = vadd.f32 %v695, %v696
        %v698 = vsel %vm516, %v668, 0.0
        %v699 = vadd.f32 %v697, %v698
        %v700 = vsel %vm516, %v669, 0.0
        %v701 = vadd.f32 %v699, %v700
        %702 = vadd.xlane.f32.xlu0 %v701
        %v703 = vpop.xlane.xlu0 %702
        %v704 = vrot.slane %v703, 4
        %v705 = vadd.f32 %v703, %v704
        %v706 = vrot.slane %v705, 2
        %v707 = vadd.f32 %v705, %v706
        %v708 = vrot.slane %v707, 1
        %v709 = vadd.f32 %v707, %v708
        %s710 = vtos %v709
        %s711 = smul.f32 %s710, 0.0078125
        %v712 = vstv %s711
        %v713 = vadd.f32 %v670, %v712
        %714 = vst [vmem:[%s196] sm:$0xff] %v713
      $region44: #{chamfer_loss.1} parent=27 // pred_fallthru
        _
      // Predicated region
      $region45: #{chamfer_loss.1} parent=27 // pred_check
        %p715 = pneg %p197
      $region46: #{chamfer_loss.1} parent=27 // pred_check_branch
        %717 = sbr.rel (%p715) target = $region48
      $region47: #{chamfer_loss.1} parent=27 // pred_region
        %v718 = vld [vmem:[%s543] sm:$0x1]
        %v719 = vmax.f32 %v718, 0.0
        %v720 = vlaneseq
        %v721 = vand.u32 %v720, 127
        %v722 = vstv %s533
        %v723 = vadd.s32 %v721, %v722
        %vm724 = vcmp.lt.s32.totalorder %v723, 128
        %v725 = vsel %vm724, %v719, 0.0
        %v726 = vld [vmem:[%s196] sm:$0xff]
        %vm727 = vcmask 1040384
        %v728 = vsel %vm727, %v725, 0.0
        %729 = vadd.xlane.f32.xlu0 %v728
        %v730 = vpop.xlane.xlu0 %729
        %v731 = vrot.slane %v730, 4
        %v732 = vadd.f32 %v730, %v731
        %v733 = vrot.slane %v732, 2
        %v734 = vadd.f32 %v732, %v733
        %v735 = vrot.slane %v734, 1
        %v736 = vadd.f32 %v734, %v735
        %s737 = vtos %v736
        %s738 = smul.f32 %s737, 0.0078125
        %v739 = vstv %s738
        %v740 = vadd.f32 %v726, %v739
        %741 = vst [vmem:[%s196] sm:$0xff] %v740
      $region48: #{chamfer_loss.1} parent=27 // pred_fallthru
        _
      %p742 = scmp.lt.s32.totalorder %s18, 1
      %s743 = scalar_select %p742, %s18, 1
      %s744 = smul.addr %s743, 8
      %s745 = scalar_lea.vmem %s2, %s744
      // Predicated region
      $region49: #{chamfer_loss.1} parent=27 // pred_check
        %p746 = pneg %p106
      $region50: #{chamfer_loss.1} parent=27 // pred_check_branch
        %748 = sbr.rel (%p746) target = $region52
      $region51: #{chamfer_loss.1} parent=27 // pred_region
        _
      $region52: #{chamfer_loss.1} parent=27 // pred_fallthru
        _
    $region28: #{chamfer_loss.1} parent=5 // pred_fallthru
      _
    %p749 = scmp.le.s32.totalorder 2, %s8
    // Predicated region
    $region53: #{chamfer_loss.1} parent=5 // pred_check
      %p750 = pneg %p749
    $region54: #{chamfer_loss.1} parent=5 // pred_check_branch
      %752 = sbr.rel (%p750) target = $region56
    $region55: #{chamfer_loss.1} parent=5 // pred_region
      %s753 = ssub.s32 %s8, 2
      // Predicated region
      $region57: #{chamfer_loss.1} parent=55 // pred_check
        %p754 = pneg %p112
      $region58: #{chamfer_loss.1} parent=55 // pred_check_branch
        %756 = sbr.rel (%p754) target = $region60
      $region59: #{chamfer_loss.1} parent=55 // pred_region
        %p757 = scmp.lt.s32.totalorder %s21, 1
        %s758 = scalar_select %p757, %s21, 1
        %s759 = smul.addr %s758, 8
        %s760 = scalar_lea.vmem %s2, %s759
      $region60: #{chamfer_loss.1} parent=55 // pred_fallthru
        _
    $region56: #{chamfer_loss.1} parent=5 // pred_fallthru
      _
  $region6: #{chamfer_loss.1} parent=0 // loop_footer
    %s12 = sadd.s32 1, %s8
  $region7: #{chamfer_loss.1} parent=0 // loop_footer_branch
    %7 = sbr.rel target = $region3
  $region8: #{chamfer_loss.1} parent=0 // loop_exit
    _

</llo_original>
